<compile_context>
chip_gen: v7x
topology: tpu7x:2x2x1
jax: 0.10.0
libtpu: 0.0.40
codegen_flags: <defaults>
</compile_context>

<pallas_src>
import functools

import jax
import jax.numpy as jnp
from jax import lax
from jax.experimental import pallas as pl
from jax.experimental.pallas import tpu as pltpu


# ---------------------------------------------------------------------------
# helpers
# ---------------------------------------------------------------------------
def _round_up(v, m):
    return ((v + m - 1) // m) * m


def _pad_to(a, shape):
    pads = [(0, s - d) for d, s in zip(a.shape, shape)]
    return jnp.pad(a, pads)


def _select_tiles(N, M, Fp_max, Hd_max, Cd_max, act_bytes, inc_bytes,
                  tile_n_req, tile_m_req, vmem_budget, resident_budget):
    """Pick (tile_n, tile_m) that fit the VMEM budget and decide operand residency.

    tile_n is kept a multiple of 32 (int8 sublane tile), tile_m a multiple of 128.
    """
    tile_n = max(32, min(_round_up(tile_n_req, 32), _round_up(N, 32)))
    tile_m = max(128, min(_round_up(tile_m_req, 128), _round_up(M, 128)))
    Np = Mp = 0
    x_res = ew_res = False
    need = 0
    for _ in range(64):
        Np = _round_up(N, tile_n)
        Mp = _round_up(M, tile_m)
        # Full-array residency (double-buffered even with a constant index map).
        x_res = 2 * Np * Fp_max * act_bytes <= resident_budget
        ew_res = 2 * Mp * Cd_max * act_bytes <= resident_budget
        edge = (
            (2 * Np * Fp_max * act_bytes if x_res else 2 * tile_n * Fp_max * act_bytes)
            + 2 * tile_n * tile_m * inc_bytes            # incidence tile
            + 2 * tile_m * 128 * 4                       # edge_scales (lane padded)
            + 2 * Fp_max * Hd_max * act_bytes            # W1
            + 2 * Hd_max * Cd_max * act_bytes            # W2
            + 2 * 8 * (Hd_max + Cd_max) * 4              # b1, b2 (f32, sublane padded)
            + 2 * tile_m * Cd_max * act_bytes            # ew output tile
            + tile_m * Fp_max * 4)                       # f32 accumulator
        node = (
            2 * tile_n * tile_m * inc_bytes
            + (2 * Mp * Cd_max * act_bytes if ew_res else 2 * tile_m * Cd_max * act_bytes)
            + 2 * tile_n * 128 * 4                       # node_scales (lane padded)
            + 2 * tile_n * Cd_max * 4                    # output tile (f32 worst case)
            + tile_n * Cd_max * 4)                       # f32 accumulator
        need = max(edge, node)
        if need <= vmem_budget:
            break
        if tile_m > 128 and tile_m >= tile_n:
            tile_m = max(128, (tile_m // 2 // 128) * 128)
        elif tile_n > 32:
            tile_n = max(32, (tile_n // 2 // 32) * 32)
        elif tile_m > 128:
            tile_m = max(128, (tile_m // 2 // 128) * 128)
        else:
            break
    return tile_n, tile_m, Np, Mp, x_res, ew_res, need


# ---------------------------------------------------------------------------
# edge stage:
#   acc[m]  = sum_n H[n,m] * act[n]                      (act already D_v_beta-scaled)
#   e[m]    = (acc[m] @ W1) * D_e_beta_inv[m] + (D_e_beta_inv*colsum_beta)[m] * b1
#   e       = relu(e)            (if nonlinear_inbetween)
#   ew[m]   = (e[m] @ W2 + b2) * D_e_alpha[m]
# grid = (M tiles [parallel], N tiles [reduction, arbitrary])
# ---------------------------------------------------------------------------
def _edge_stage_kernel(x_ref, h_ref, es_ref, w1_ref, b1_ref, w2_ref, b2_ref,
                       ew_ref, acc_ref, *, nonlinear_inbetween, compute_dtype,
                       x_resident, tile_n):
    n = pl.program_id(1)

    @pl.when(n == 0)
    def _():
        acc_ref[...] = jnp.zeros_like(acc_ref)

    if x_resident:
        # act held fully resident (fetched once); slice the rows for this n-tile.
        row = pl.multiple_of(n * tile_n, tile_n)
        xv = x_ref[pl.ds(row, tile_n), :]
    else:
        xv = x_ref[...]

    # int8 {0,1} incidence tile -> compute dtype (free VPU filler in a mem-bound loop).
    hv = h_ref[...].astype(compute_dtype)
    # (tile_n, tile_m) contracted on dim 0 with (tile_n, Fp) -> (tile_m, Fp); no H^T built.
    acc_ref[...] += lax.dot_general(
        hv, xv, dimension_numbers=(((0,), (0,)), ((), ())),
        preferred_element_type=jnp.float32)

    @pl.when(n == pl.num_programs(1) - 1)
    def _():
        es = es_ref[...]                      # (tile_m, 3) f32
        row_scale = es[:, 0:1]                # D_e_beta_inv
        bias_coef = es[:, 1:2]                # D_e_beta_inv * colsum(D_v_beta * H)
        out_scale = es[:, 2:3]                # D_e_alpha
        e = jnp.dot(acc_ref[...].astype(compute_dtype), w1_ref[...],
                    preferred_element_type=jnp.float32)
        e = e * row_scale + bias_coef * b1_ref[...]
        if nonlinear_inbetween:
            e = jnp.maximum(e, 0.0)
        ew = jnp.dot(e.astype(compute_dtype), w2_ref[...],
                     preferred_element_type=jnp.float32)
        ew = (ew + b2_ref[...]) * out_scale
        ew_ref[...] = ew.astype(ew_ref.dtype)


def _edge_stage(act, inc, edge_scales, w1, b1, w2, b2, *, tile_n, tile_m,
                x_resident, nonlinear_inbetween, compute_dtype, out_dtype,
                vmem_limit):
    Np, Fp = act.shape
    Mp = inc.shape[1]
    Hd = w1.shape[1]
    Cd = w2.shape[1]
    grid = (Mp // tile_m, Np // tile_n)

    if x_resident:
        x_spec = pl.BlockSpec((Np, Fp), lambda m, n: (0, 0))   # fetched once
    else:
        x_spec = pl.BlockSpec((tile_n, Fp), lambda m, n: (n, 0))

    kernel = functools.partial(
        _edge_stage_kernel, nonlinear_inbetween=nonlinear_inbetween,
        compute_dtype=compute_dtype, x_resident=x_resident, tile_n=tile_n)

    return pl.pallas_call(
        kernel,
        out_shape=jax.ShapeDtypeStruct((Mp, Cd), out_dtype),
        grid_spec=pltpu.PrefetchScalarGridSpec(
            num_scalar_prefetch=0,
            grid=grid,
            in_specs=[
                x_spec,                                                 # act
                pl.BlockSpec((tile_n, tile_m), lambda m, n: (n, m)),    # H (int8)
                pl.BlockSpec((tile_m, 3), lambda m, n: (m, 0)),         # edge scales
                pl.BlockSpec((Fp, Hd), lambda m, n: (0, 0)),            # W1
                pl.BlockSpec((1, Hd), lambda m, n: (0, 0)),             # b1
                pl.BlockSpec((Hd, Cd), lambda m, n: (0, 0)),            # W2
                pl.BlockSpec((1, Cd), lambda m, n: (0, 0)),             # b2
            ],
            out_specs=pl.BlockSpec((tile_m, Cd), lambda m, n: (m, 0)),
            scratch_shapes=[pltpu.VMEM((tile_m, Fp), jnp.float32)],
        ),
        compiler_params=pltpu.CompilerParams(
            dimension_semantics=("parallel", "arbitrary"),
            vmem_limit_bytes=vmem_limit),
    )(act, inc, edge_scales, w1, b1, w2, b2)


# ---------------------------------------------------------------------------
# node stage:
#   out[n] = D_v_alpha_inv[n] * sum_m H[n,m] * ew[m]
#   (non-last layers additionally:  out = relu(out) * D_v_beta[n]  — the D_v_beta
#    pre-scale for the next layer's edge stage, keeping the incidence unscaled.)
# grid = (N tiles [parallel], M tiles [reduction, arbitrary])
# ---------------------------------------------------------------------------
def _node_stage_kernel(h_ref, ew_ref, ns_ref, o_ref, acc_ref, *,
                       relu_and_rescale, compute_dtype, ew_resident, tile_m):
    m = pl.program_id(1)

    @pl.when(m == 0)
    def _():
        acc_ref[...] = jnp.zeros_like(acc_ref)

    if ew_resident:
        row = pl.multiple_of(m * tile_m, tile_m)
        ewv = ew_ref[pl.ds(row, tile_m), :]
    else:
        ewv = ew_ref[...]

    hv = h_ref[...].astype(compute_dtype)
    acc_ref[...] += jnp.dot(hv, ewv, preferred_element_type=jnp.float32)

    @pl.when(m == pl.num_programs(1) - 1)
    def _():
        ns = ns_ref[...]                       # (tile_n, 2) f32
        out = acc_ref[...] * ns[:, 0:1]        # D_v_alpha_inv
        if relu_and_rescale:
            out = jnp.maximum(out, 0.0) * ns[:, 1:2]   # relu, then D_v_beta pre-scale
        o_ref[...] = out.astype(o_ref.dtype)


def _node_stage(inc, ew, node_scales, *, tile_n, tile_m, ew_resident,
                relu_and_rescale, compute_dtype, out_dtype, vmem_limit):
    Np, Mp = inc.shape
    Cd = ew.shape[1]
    grid = (Np // tile_n, Mp // tile_m)

    if ew_resident:
        ew_spec = pl.BlockSpec((Mp, Cd), lambda n, m: (0, 0))   # fetched once
    else:
        ew_spec = pl.BlockSpec((tile_m, Cd), lambda n, m: (m, 0))

    kernel = functools.partial(
        _node_stage_kernel, relu_and_rescale=relu_and_rescale,
        compute_dtype=compute_dtype, ew_resident=ew_resident, tile_m=tile_m)

    return pl.pallas_call(
        kernel,
        out_shape=jax.ShapeDtypeStruct((Np, Cd), out_dtype),
        grid_spec=pltpu.PrefetchScalarGridSpec(
            num_scalar_prefetch=0,
            grid=grid,
            in_specs=[
                pl.BlockSpec((tile_n, tile_m), lambda n, m: (n, m)),    # H (int8)
                ew_spec,                                                # ew
                pl.BlockSpec((tile_n, 2), lambda n, m: (n, 0)),         # node scales
            ],
            out_specs=pl.BlockSpec((tile_n, Cd), lambda n, m: (n, 0)),
            scratch_shapes=[pltpu.VMEM((tile_n, Cd), jnp.float32)],
        ),
        compiler_params=pltpu.CompilerParams(
            dimension_semantics=("parallel", "arbitrary"),
            vmem_limit_bytes=vmem_limit),
    )(inc, ew, node_scales)


# ---------------------------------------------------------------------------
# layer-invariant preparation (hoisted: call once, reuse across forwards)
# ---------------------------------------------------------------------------
def hnhn_prepare(H, norms, params, *, incidence_dtype=jnp.int8,
                 compute_dtype=jnp.bfloat16, tile_n=1024, tile_m=2048,
                 vmem_budget_bytes=44 * 1024 * 1024,
                 resident_budget_bytes=16 * 1024 * 1024):
    N, M = H.shape
    D_v_beta, D_e_beta_inv, D_e_alpha, D_v_alpha_inv = norms
    Hf = H.astype(jnp.float32)

    fin = [W1.shape[0] for (W1, _, _, _) in params]
    hid = [W1.shape[1] for (W1, _, _, _) in params]
    cout = [W2.shape[1] for (_, _, W2, _) in params]
    Fp_max = max(_round_up(d, 128) for d in fin)
    Hd_max = max(_round_up(d, 128) for d in hid)
    Cd_max = max(_round_up(d, 128) for d in cout)
    act_bytes = jnp.dtype(compute_dtype).itemsize
    inc_bytes = jnp.dtype(incidence_dtype).itemsize

    tn, tm, Np, Mp, x_res, ew_res, need = _select_tiles(
        N, M, Fp_max, Hd_max, Cd_max, act_bytes, inc_bytes,
        tile_n, tile_m, vmem_budget_bytes, resident_budget_bytes)
    # 48 MiB cap keeps headroom on v7x (64 MiB/TC); plenty for v5e/v6e too.
    vmem_limit = int(min(48 * 1024 * 1024, max(32 * 1024 * 1024, need * 5 // 4)))

    # Single padded incidence copy; {0,1} values are exact in int8.
    inc = _pad_to(Hf, (Np, Mp)).astype(incidence_dtype)

    # Per-edge scales, lane-stacked into one (Mp, 3) array:
    #   col0 = D_e_beta_inv, col1 = D_e_beta_inv * colsum(D_v_beta*H), col2 = D_e_alpha
    colsum_beta = jnp.sum(D_v_beta[:, None] * Hf, axis=0)
    edge_scales = jnp.stack(
        [D_e_beta_inv, D_e_beta_inv * colsum_beta, D_e_alpha], axis=1
    ).astype(jnp.float32)
    edge_scales = _pad_to(edge_scales, (Mp, 3))

    # Per-node scales: col0 = D_v_alpha_inv, col1 = D_v_beta (next-layer pre-scale).
    node_scales = jnp.stack([D_v_alpha_inv, D_v_beta], axis=1).astype(jnp.float32)
    node_scales = _pad_to(node_scales, (Np, 2))

    dv_beta_col = _pad_to(D_v_beta.astype(jnp.float32)[:, None], (Np, 1))

    layers = []
    for (W1, b1, W2, b2) in params:
        fp = _round_up(W1.shape[0], 128)
        hd = _round_up(W1.shape[1], 128)
        cd = _round_up(W2.shape[1], 128)
        layers.append(dict(
            W1=_pad_to(W1, (fp, hd)).astype(compute_dtype),
            b1=_pad_to(b1.reshape(1, -1), (1, hd)).astype(jnp.float32),
            W2=_pad_to(W2, (hd, cd)).astype(compute_dtype),
            b2=_pad_to(b2.reshape(1, -1), (1, cd)).astype(jnp.float32),
        ))

    return dict(
        N=N, M=M, Np=Np, Mp=Mp, tile_n=tn, tile_m=tm,
        x_resident=x_res, ew_resident=ew_res, vmem_limit=vmem_limit,
        compute_dtype=compute_dtype, out_channels=params[-1][2].shape[1],
        inc=inc, edge_scales=edge_scales, node_scales=node_scales,
        dv_beta_col=dv_beta_col, layers=layers)


def hnhn_apply(x, prep, *, nonlinear_inbetween=True):
    N = prep["N"]
    Np = prep["Np"]
    cdt = prep["compute_dtype"]
    layers = prep["layers"]
    n_layers = len(layers)
    Fp0 = layers[0]["W1"].shape[0]

    # Layer-0 activations, pre-scaled by D_v_beta (later layers get this from the
    # node-stage epilogue).
    act = (_pad_to(x.astype(jnp.float32), (Np, Fp0)) * prep["dv_beta_col"]).astype(cdt)

    for li, layer in enumerate(layers):
        last = li == n_layers - 1
        ew = _edge_stage(
            act, prep["inc"], prep["edge_scales"],
            layer["W1"], layer["b1"], layer["W2"], layer["b2"],
            tile_n=prep["tile_n"], tile_m=prep["tile_m"],
            x_resident=prep["x_resident"],
            nonlinear_inbetween=nonlinear_inbetween,
            compute_dtype=cdt, out_dtype=cdt, vmem_limit=prep["vmem_limit"])
        act = _node_stage(
            prep["inc"], ew, prep["node_scales"],
            tile_n=prep["tile_n"], tile_m=prep["tile_m"],
            ew_resident=prep["ew_resident"],
            relu_and_rescale=not last,
            compute_dtype=cdt,
            out_dtype=jnp.float32 if last else cdt,
            vmem_limit=prep["vmem_limit"])
        # TODO(synk): F.dropout(training=True) between layers omitted (identity).

    return act[:N, :prep["out_channels"]]


def hnhn_forward(x, H, norms, params, *, nonlinear_inbetween=True,
                 incidence_dtype=jnp.int8, compute_dtype=jnp.bfloat16,
                 tile_n=1024, tile_m=2048):
    prep = hnhn_prepare(H, norms, params, incidence_dtype=incidence_dtype,
                        compute_dtype=compute_dtype, tile_n=tile_n, tile_m=tile_m)
    return hnhn_apply(x, prep, nonlinear_inbetween=nonlinear_inbetween)


# ---------------------------------------------------------------------------
# references
# ---------------------------------------------------------------------------
def hnhn_reference(x, H, norms, params, *, nonlinear_inbetween=True):
    """Original (unfolded) HNHN module math in float32."""
    D_v_beta, D_e_beta_inv, D_e_alpha, D_v_alpha_inv = norms
    n_layers = len(params)
    out = x
    for li, (W1, b1, W2, b2) in enumerate(params):
        h = D_v_beta[:, None] * (out @ W1 + b1)
        e = D_e_beta_inv[:, None] * (H.T @ h)
        if nonlinear_inbetween:
            e = jnp.maximum(e, 0.0)
        ev = D_e_alpha[:, None] * (e @ W2 + b2)
        out = D_v_alpha_inv[:, None] * (H @ ev)
        if li < n_layers - 1:
            out = jnp.maximum(out, 0.0)
    return out


def hnhn_reference_folded(x, H, norms, params, *, nonlinear_inbetween=True,
                          dtype=jnp.bfloat16):
    """Pure-JAX mirror of the kernel's reassociated / quantized compute path."""
    D_v_beta, D_e_beta_inv, D_e_alpha, D_v_alpha_inv = norms
    Hf = H.astype(jnp.float32)
    colsum_beta = jnp.sum(D_v_beta[:, None] * Hf, axis=0)
    row_scale = D_e_beta_inv[:, None]
    bias_coef = (D_e_beta_inv * colsum_beta)[:, None]
    out_scale = D_e_alpha[:, None]
    Hq = Hf.astype(dtype)                       # {0,1}: exact in any dtype
    act = (D_v_beta[:, None] * x).astype(dtype)
    n_layers = len(params)
    out = None
    for li, (W1, b1, W2, b2) in enumerate(params):
        acc = lax.dot_general(Hq, act, (((0,), (0,)), ((), ())),
                              preferred_element_type=jnp.float32)
        e = jnp.dot(acc.astype(dtype), W1.astype(dtype),
                    preferred_element_type=jnp.float32)
        e = e * row_scale + bias_coef * b1[None, :]
        if nonlinear_inbetween:
            e = jnp.maximum(e, 0.0)
        ew = jnp.dot(e.astype(dtype), W2.astype(dtype),
                     preferred_element_type=jnp.float32)
        ew = ((ew + b2[None, :]) * out_scale).astype(dtype)
        nodes = jnp.dot(Hq, ew, preferred_element_type=jnp.float32)
        nodes = nodes * D_v_alpha_inv[:, None]
        if li < n_layers - 1:
            act = (jnp.maximum(nodes, 0.0) * D_v_beta[:, None]).astype(dtype)
        else:
            out = nodes
    return out


def init_linear(key, fan_in, fan_out):
    """Deterministic init mimicking torch.nn.Linear.reset_parameters()."""
    kw, kb = jax.random.split(key)
    bound = 1.0 / jnp.sqrt(jnp.float32(fan_in))
    W = jax.random.uniform(kw, (fan_in, fan_out), jnp.float32, -bound, bound)
    b = jax.random.uniform(kb, (fan_out,), jnp.float32, -bound, bound)
    return W, b


# ---------------------------------------------------------------------------
# demo / correctness check
# ---------------------------------------------------------------------------
if __name__ == "__main__":
    key = jax.random.PRNGKey(0)

    N, M = 32, 16                  # nodes, hyperedges
    num_features = 16
    hidden_channels = 32
    out_channels = 8

    k_x, k_h, k_n1, k_n2, k_n3, k_n4, k_p1, k_p2 = jax.random.split(key, 8)

    x = jax.random.normal(k_x, (N, num_features), jnp.float32)
    H = (jax.random.uniform(k_h, (N, M)) < 0.25).astype(jnp.float32)

    D_v_beta = jax.random.uniform(k_n1, (N,), jnp.float32, 0.5, 1.5)
    D_e_beta_inv = jax.random.uniform(k_n2, (M,), jnp.float32, 0.5, 1.5)
    D_e_alpha = jax.random.uniform(k_n3, (M,), jnp.float32, 0.5, 1.5)
    D_v_alpha_inv = jax.random.uniform(k_n4, (N,), jnp.float32, 0.5, 1.5)
    norms = (D_v_beta, D_e_beta_inv, D_e_alpha, D_v_alpha_inv)

    # 2-layer HNHN: (F -> hidden -> hidden) then (hidden -> hidden -> out)
    params = []
    k0a, k0b = jax.random.split(k_p1)
    params.append(init_linear(k0a, num_features, hidden_channels)
                  + init_linear(k0b, hidden_channels, hidden_channels))
    k1a, k1b = jax.random.split(k_p2)
    params.append(init_linear(k1a, hidden_channels, hidden_channels)
                  + init_linear(k1b, hidden_channels, out_channels))

    # 1) strict check: f32 compute path (int8 incidence stores {0,1} exactly)
    #    vs. the original module math.
    out_f32 = jax.block_until_ready(
        hnhn_forward(x, H, norms, params, compute_dtype=jnp.float32))
    ref = hnhn_reference(x, H, norms, params)
    assert out_f32.shape == (N, out_channels), out_f32.shape
    assert jnp.allclose(out_f32, ref, atol=3e-3, rtol=3e-3), "f32 mismatch vs reference"

    # 2) perf config: int8 incidence + bf16 activations/weights, f32 accumulation.
    #    Prep is hoisted (hnhn_prepare) and reused by hnhn_apply.
    prep = hnhn_prepare(H, norms, params, compute_dtype=jnp.bfloat16)
    out_bf16 = jax.block_until_ready(hnhn_apply(x, prep))
    ref_bf16 = hnhn_reference_folded(x, H, norms, params, dtype=jnp.bfloat16)
    assert out_bf16.shape == (N, out_channels), out_bf16.shape
    assert jnp.allclose(out_bf16, ref_bf16, atol=2e-2, rtol=2e-2), "bf16 mismatch vs reference"

    print("KERNEL_OK")
</pallas_src>

<mosaic_0001>
module attributes {stable_mosaic.version = 11 : i64} {
  func.func @_edge_stage_kernel(%arg0: i32, %arg1: i32, %arg2: memref<32x128xf32, #tpu.memory_space<vmem>>, %arg3: memref<32x128xi8, #tpu.memory_space<vmem>>, %arg4: memref<128x3xf32, #tpu.memory_space<vmem>>, %arg5: memref<128x128xf32, #tpu.memory_space<vmem>>, %arg6: memref<1x128xf32, #tpu.memory_space<vmem>>, %arg7: memref<128x128xf32, #tpu.memory_space<vmem>>, %arg8: memref<1x128xf32, #tpu.memory_space<vmem>>, %arg9: memref<128x128xf32, #tpu.memory_space<vmem>>, %arg10: memref<128x128xf32, #tpu.memory_space<vmem>>) attributes {dimension_semantics = [#tpu.dimension_semantics<parallel>, #tpu.dimension_semantics<arbitrary>], iteration_bounds = array<i64: 1, 1>, scalar_prefetch = 0 : i64, scratch_operands = 1 : i64, tpu.core_type = #tpu.core_type<tc>, window_params = [{pipeline_mode = #tpu.pipeline_mode<synchronous>, transform_indices = @transform_0, window_bounds = array<i64: 32, 128>}, {transform_indices = @transform_1, window_bounds = array<i64: 32, 128>}, {transform_indices = @transform_2, window_bounds = array<i64: 128, 3>}, {pipeline_mode = #tpu.pipeline_mode<synchronous>, transform_indices = @transform_3, window_bounds = array<i64: 128, 128>}, {pipeline_mode = #tpu.pipeline_mode<synchronous>, transform_indices = @transform_4, window_bounds = array<i64: 1, 128>}, {pipeline_mode = #tpu.pipeline_mode<synchronous>, transform_indices = @transform_5, window_bounds = array<i64: 128, 128>}, {pipeline_mode = #tpu.pipeline_mode<synchronous>, transform_indices = @transform_6, window_bounds = array<i64: 1, 128>}, {transform_indices = @transform_7, window_bounds = array<i64: 128, 128>}]} {
    %c0_i32 = arith.constant 0 : i32
    %0 = arith.cmpi eq, %arg1, %c0_i32 : i32
    %1 = arith.extui %0 : i1 to i32
    %c0_i32_0 = arith.constant 0 : i32
    %2 = arith.cmpi ne, %1, %c0_i32_0 : i32
    scf.if %2 {
      %cst_9 = arith.constant 0.000000e+00 : f32
      %16 = vector.broadcast %cst_9 : f32 to vector<128x128xf32>
      %c0_10 = arith.constant 0 : index
      %c0_11 = arith.constant 0 : index
      %17 = vector.load %arg10[%c0_10, %c0_11] : memref<128x128xf32, #tpu.memory_space<vmem>>, vector<128x128xf32>
      tpu.vector_store %arg10[%c0_10, %c0_11], %16 {strides = array<i32>} : memref<128x128xf32, #tpu.memory_space<vmem>>, vector<128x128xf32>,
    } else {
    }
    %c32_i32 = arith.constant 32 : i32
    %3 = arith.muli %arg1, %c32_i32 : i32
    %4 = tpu.assume_multiple %3, 32 : i32
    %5 = arith.index_cast %4 : i32 to index
    %c0 = arith.constant 0 : index
    %6 = vector.load %arg2[%5, %c0] : memref<32x128xf32, #tpu.memory_space<vmem>>, vector<32x128xf32>
    %c0_1 = arith.constant 0 : index
    %c0_2 = arith.constant 0 : index
    %7 = vector.load %arg3[%c0_1, %c0_2] : memref<32x128xi8, #tpu.memory_space<vmem>>, vector<32x128xi8>
    %8 = arith.sitofp %7 : vector<32x128xi8> to vector<32x128xf32>
    %c0_3 = arith.constant 0 : index
    %c0_4 = arith.constant 0 : index
    %9 = vector.load %arg10[%c0_3, %c0_4] : memref<128x128xf32, #tpu.memory_space<vmem>>, vector<128x128xf32>
    %cst = arith.constant dense<0.000000e+00> : vector<128x128xf32>
    %10 = tpu.matmul %8, %6, %cst {dimension_numbers = #tpu.dot_dimension_numbers<[0], [0], [1], [1], [0, 1, 1, 1], [], []>} : vector<32x128xf32>, vector<32x128xf32>, vector<128x128xf32> -> vector<128x128xf32>
    %11 = arith.addf %9, %10 : vector<128x128xf32>
    %c0_5 = arith.constant 0 : index
    %c0_6 = arith.constant 0 : index
    %12 = vector.load %arg10[%c0_5, %c0_6] : memref<128x128xf32, #tpu.memory_space<vmem>>, vector<128x128xf32>
    tpu.vector_store %arg10[%c0_5, %c0_6], %11 {strides = array<i32>} : memref<128x128xf32, #tpu.memory_space<vmem>>, vector<128x128xf32>,
    %c0_i32_7 = arith.constant 0 : i32
    %13 = arith.cmpi eq, %arg1, %c0_i32_7 : i32
    %14 = arith.extui %13 : i1 to i32
    %c0_i32_8 = arith.constant 0 : i32
    %15 = arith.cmpi ne, %14, %c0_i32_8 : i32
    scf.if %15 {
      %c0_9 = arith.constant 0 : index
      %c0_10 = arith.constant 0 : index
      %16 = vector.load %arg4[%c0_9, %c0_10] : memref<128x3xf32, #tpu.memory_space<vmem>>, vector<128x3xf32>
      %17 = vector.extract_strided_slice %16 {offsets = [0, 0], sizes = [128, 1], strides = [1, 1]} : vector<128x3xf32> to vector<128x1xf32>
      %18 = vector.extract_strided_slice %16 {offsets = [0, 1], sizes = [128, 1], strides = [1, 1]} : vector<128x3xf32> to vector<128x1xf32>
      %19 = vector.extract_strided_slice %16 {offsets = [0, 2], sizes = [128, 1], strides = [1, 1]} : vector<128x3xf32> to vector<128x1xf32>
      %c0_11 = arith.constant 0 : index
      %c0_12 = arith.constant 0 : index
      %20 = vector.load %arg10[%c0_11, %c0_12] : memref<128x128xf32, #tpu.memory_space<vmem>>, vector<128x128xf32>
      %c0_13 = arith.constant 0 : index
      %c0_14 = arith.constant 0 : index
      %21 = vector.load %arg5[%c0_13, %c0_14] : memref<128x128xf32, #tpu.memory_space<vmem>>, vector<128x128xf32>
      %cst_15 = arith.constant dense<0.000000e+00> : vector<128x128xf32>
      %22 = tpu.matmul %20, %21, %cst_15 {dimension_numbers = #tpu.dot_dimension_numbers<[1], [0], [0], [1], [0, 0, 1, 1], [], []>} : vector<128x128xf32>, vector<128x128xf32>, vector<128x128xf32> -> vector<128x128xf32>
      %23 = vector.broadcast %17 : vector<128x1xf32> to vector<128x128xf32>
      %24 = arith.mulf %22, %23 : vector<128x128xf32>
      %c0_16 = arith.constant 0 : index
      %c0_17 = arith.constant 0 : index
      %25 = vector.load %arg6[%c0_16, %c0_17] : memref<1x128xf32, #tpu.memory_space<vmem>>, vector<1x128xf32>
      %26 = vector.broadcast %18 : vector<128x1xf32> to vector<128x128xf32>
      %27 = vector.broadcast %25 : vector<1x128xf32> to vector<128x128xf32>
      %28 = arith.mulf %26, %27 : vector<128x128xf32>
      %29 = arith.addf %24, %28 : vector<128x128xf32>
      %cst_18 = arith.constant 0.000000e+00 : f32
      %30 = vector.broadcast %cst_18 : f32 to vector<128x128xf32>
      %31 = arith.maximumf %29, %30 : vector<128x128xf32>
      %c0_19 = arith.constant 0 : index
      %c0_20 = arith.constant 0 : index
      %32 = vector.load %arg7[%c0_19, %c0_20] : memref<128x128xf32, #tpu.memory_space<vmem>>, vector<128x128xf32>
      %cst_21 = arith.constant dense<0.000000e+00> : vector<128x128xf32>
      %33 = tpu.matmul %31, %32, %cst_21 {dimension_numbers = #tpu.dot_dimension_numbers<[1], [0], [0], [1], [0, 0, 1, 1], [], []>} : vector<128x128xf32>, vector<128x128xf32>, vector<128x128xf32> -> vector<128x128xf32>
      %c0_22 = arith.constant 0 : index
      %c0_23 = arith.constant 0 : index
      %34 = vector.load %arg8[%c0_22, %c0_23] : memref<1x128xf32, #tpu.memory_space<vmem>>, vector<1x128xf32>
      %35 = vector.broadcast %34 : vector<1x128xf32> to vector<128x128xf32>
      %36 = arith.addf %33, %35 : vector<128x128xf32>
      %37 = vector.broadcast %19 : vector<128x1xf32> to vector<128x128xf32>
      %38 = arith.mulf %36, %37 : vector<128x128xf32>
      %c0_24 = arith.constant 0 : index
      %c0_25 = arith.constant 0 : index
      %39 = vector.load %arg9[%c0_24, %c0_25] : memref<128x128xf32, #tpu.memory_space<vmem>>, vector<128x128xf32>
      tpu.vector_store %arg9[%c0_24, %c0_25], %38 {strides = array<i32>} : memref<128x128xf32, #tpu.memory_space<vmem>>, vector<128x128xf32>,
    } else {
    }
    return
  }
  func.func @transform_0(%arg0: i32, %arg1: i32) -> (i32, i32) {
    %c0_i32 = arith.constant 0 : i32
    %c0_i32_0 = arith.constant 0 : i32
    %c0_i32_1 = arith.constant 0 : i32
    return %c0_i32, %c0_i32_0 : i32, i32
  }
  func.func @transform_1(%arg0: i32, %arg1: i32) -> (i32, i32) {
    %c0_i32 = arith.constant 0 : i32
    return %arg1, %arg0 : i32, i32
  }
  func.func @transform_2(%arg0: i32, %arg1: i32) -> (i32, i32) {
    %c0_i32 = arith.constant 0 : i32
    %c0_i32_0 = arith.constant 0 : i32
    return %arg0, %c0_i32 : i32, i32
  }
  func.func @transform_3(%arg0: i32, %arg1: i32) -> (i32, i32) {
    %c0_i32 = arith.constant 0 : i32
    %c0_i32_0 = arith.constant 0 : i32
    %c0_i32_1 = arith.constant 0 : i32
    return %c0_i32, %c0_i32_0 : i32, i32
  }
  func.func @transform_4(%arg0: i32, %arg1: i32) -> (i32, i32) {
    %c0_i32 = arith.constant 0 : i32
    %c0_i32_0 = arith.constant 0 : i32
    %c0_i32_1 = arith.constant 0 : i32
    return %c0_i32, %c0_i32_0 : i32, i32
  }
  func.func @transform_5(%arg0: i32, %arg1: i32) -> (i32, i32) {
    %c0_i32 = arith.constant 0 : i32
    %c0_i32_0 = arith.constant 0 : i32
    %c0_i32_1 = arith.constant 0 : i32
    return %c0_i32, %c0_i32_0 : i32, i32
  }
  func.func @transform_6(%arg0: i32, %arg1: i32) -> (i32, i32) {
    %c0_i32 = arith.constant 0 : i32
    %c0_i32_0 = arith.constant 0 : i32
    %c0_i32_1 = arith.constant 0 : i32
    return %c0_i32, %c0_i32_0 : i32, i32
  }
  func.func @transform_7(%arg0: i32, %arg1: i32) -> (i32, i32) {
    %c0_i32 = arith.constant 0 : i32
    %c0_i32_0 = arith.constant 0 : i32
    return %arg0, %c0_i32 : i32, i32
  }
}

</mosaic_0001>

<llo_original>
// kernel: tpu_custom_call.1
$region0: #{tpu_custom_call.1}
  #allocation0 [shape = 'u32[]', space=smem, size = 0x4, offset = 0x4, fixed_abs, tag = 'smem constant byte address 0x4 - core index']
  #allocation1 [shape = 'u32[144,128]{1,0:T(1,128)}', space=vmem, size = 0x12000, scoped, tag = 'internal scratch']
  #allocation2 [shape = 'f32[128,128]{1,0:T(8,128)}', space=vmem, size = 0x10000, scoped, tag = 'scratch operand']
  %s0 = inlined_call_operand.hbm [shape: f32[32,128], index: 0, kind: input, shape index: {}]
  %s1 = inlined_call_operand.vmem [shape: s8[32,128], index: 1, kind: input, shape index: {}]
  %s2 = inlined_call_operand.vmem [shape: f32[128,3], index: 2, kind: input, shape index: {}]
  %s3 = inlined_call_operand.vmem [shape: f32[128,128], index: 3, kind: input, shape index: {}]
  %s4 = inlined_call_operand.vmem [shape: f32[1,128], index: 4, kind: input, shape index: {}]
  %s5 = inlined_call_operand.hbm [shape: f32[128,128], index: 5, kind: input, shape index: {}]
  %s6 = inlined_call_operand.vmem [shape: f32[1,128], index: 6, kind: input, shape index: {}]
  %s7 = inlined_call_operand.hbm [shape: f32[128,128], index: 7, kind: output, shape index: {}]
  %s8 = sld [smem:[#allocation0]]
  $region54: #{tpu_custom_call.1} parent=0
    _
  %s10 = ssub.s32 1, %s8
  %s11 = scalar_select 0, %s10, %s8
  $region1: #{tpu_custom_call.1} parent=0
    #allocation3 [shape = 'u8[16384]{0}', space=vmem, size = 0x4000, scoped, tag = 'input window, operand 0, single buffered']
    #allocation4 [shape = 's32[1]{0}', space=sflag, size = 0x4, scoped, tag = 'scoped memory for tpu_custom_call.1']
    #allocation5 [shape = 's32[1]{0}', space=sflag, size = 0x4, scoped, tag = 'scoped memory for tpu_custom_call.1']
    #allocation6 [shape = 'u8[65536]{0}', space=vmem, size = 0x10000, scoped, tag = 'input window, operand 5, single buffered']
    #allocation7 [shape = 's32[1]{0}', space=sflag, size = 0x4, scoped, tag = 'scoped memory for tpu_custom_call.1']
    #allocation8 [shape = 'u8[65536]{0}', space=vmem, size = 0x10000, scoped, tag = 'output window, operand 0, single buffered']
    %12 = vsyncpa [#allocation4], 0
    %13 = vsyncpa [#allocation7], 0
    %14 = vsyncpa [#allocation5], 0
    // Predicated region
    $region2: #{tpu_custom_call.1} parent=1 // pred_check
      _
    $region3: #{tpu_custom_call.1} parent=1 // pred_check_branch
      %16 = sbr.rel (0) target = $region5
    $region4: #{tpu_custom_call.1} parent=1 // pred_region
      %s18 = ssub.s32 512, 512
      %19 = vsyncadd [#allocation4], %s18
      %s20 = sshll.u32 [#allocation3], 4
      %s21 = int_to_ptr.vmem [resolvable:$true] %s20
      %26 = dma.hbm_to_vmem [thread:$0]  %s0, 512, %s21, [#allocation4], 128, 128, 8
    $region5: #{tpu_custom_call.1} parent=1 // pred_fallthru
      _
    // Predicated region
    $region6: #{tpu_custom_call.1} parent=1 // pred_check
      _
    $region7: #{tpu_custom_call.1} parent=1 // pred_check_branch
      %28 = sbr.rel (0) target = $region9
    $region8: #{tpu_custom_call.1} parent=1 // pred_region
      _
    $region9: #{tpu_custom_call.1} parent=1 // pred_fallthru
      _
    // Predicated region
    $region10: #{tpu_custom_call.1} parent=1 // pred_check
      _
    $region11: #{tpu_custom_call.1} parent=1 // pred_check_branch
      %30 = sbr.rel (0) target = $region13
    $region12: #{tpu_custom_call.1} parent=1 // pred_region
      _
    $region13: #{tpu_custom_call.1} parent=1 // pred_fallthru
      _
    // Predicated region
    $region14: #{tpu_custom_call.1} parent=1 // pred_check
      _
    $region15: #{tpu_custom_call.1} parent=1 // pred_check_branch
      %32 = sbr.rel (0) target = $region17
    $region16: #{tpu_custom_call.1} parent=1 // pred_region
      _
    $region17: #{tpu_custom_call.1} parent=1 // pred_fallthru
      _
    // Predicated region
    $region18: #{tpu_custom_call.1} parent=1 // pred_check
      _
    $region19: #{tpu_custom_call.1} parent=1 // pred_check_branch
      %34 = sbr.rel (0) target = $region21
    $region20: #{tpu_custom_call.1} parent=1 // pred_region
      _
    $region21: #{tpu_custom_call.1} parent=1 // pred_fallthru
      _
    // Predicated region
    $region22: #{tpu_custom_call.1} parent=1 // pred_check
      _
    $region23: #{tpu_custom_call.1} parent=1 // pred_check_branch
      %36 = sbr.rel (0) target = $region25
    $region24: #{tpu_custom_call.1} parent=1 // pred_region
      %s38 = ssub.s32 2048, 2048
      %39 = vsyncadd [#allocation7], %s38
      %s40 = sshll.u32 [#allocation6], 4
      %s41 = int_to_ptr.vmem [resolvable:$true] %s40
      %46 = dma.hbm_to_vmem [thread:$0]  %s5, 2048, %s41, [#allocation7], 128, 128, 8
    $region25: #{tpu_custom_call.1} parent=1 // pred_fallthru
      _
    // Predicated region
    $region26: #{tpu_custom_call.1} parent=1 // pred_check
      _
    $region27: #{tpu_custom_call.1} parent=1 // pred_check_branch
      %48 = sbr.rel (0) target = $region29
    $region28: #{tpu_custom_call.1} parent=1 // pred_region
      _
    $region29: #{tpu_custom_call.1} parent=1 // pred_fallthru
      _
    // Predicated region
    $region30: #{tpu_custom_call.1} parent=1 // pred_check
      _
    $region31: #{tpu_custom_call.1} parent=1 // pred_check_branch
      %50 = sbr.rel (0) target = $region33
    $region32: #{tpu_custom_call.1} parent=1 // pred_region
      %51 = dma.done [#allocation4], 512
    $region33: #{tpu_custom_call.1} parent=1 // pred_fallthru
      _
    // Predicated region
    $region34: #{tpu_custom_call.1} parent=1 // pred_check
      _
    $region35: #{tpu_custom_call.1} parent=1 // pred_check_branch
      %53 = sbr.rel (0) target = $region37
    $region36: #{tpu_custom_call.1} parent=1 // pred_region
      %54 = dma.done [#allocation7], 2048
    $region37: #{tpu_custom_call.1} parent=1 // pred_fallthru
      _
    %p55 = scmp.eq.s32.totalorder 0, 0
    // Predicated region
    $region38: #{tpu_custom_call.1} parent=1 // pred_check
      %p56 = pneg %p55
    $region39: #{tpu_custom_call.1} parent=1 // pred_check_branch
      %58 = sbr.rel (%p56) target = $region41
    $region40: #{tpu_custom_call.1} parent=1 // pred_region
      %59 = vst [vmem:[#allocation2] sm:$0xff] 0.0
      %60 = vst [vmem:[#allocation2 + $0x8] sm:$0xff] 0.0
      %61 = vst [vmem:[#allocation2 + $0x10] sm:$0xff] 0.0
      %62 = vst [vmem:[#allocation2 + $0x18] sm:$0xff] 0.0
      %63 = vst [vmem:[#allocation2 + $0x20] sm:$0xff] 0.0
      %64 = vst [vmem:[#allocation2 + $0x28] sm:$0xff] 0.0
      %65 = vst [vmem:[#allocation2 + $0x30] sm:$0xff] 0.0
      %66 = vst [vmem:[#allocation2 + $0x38] sm:$0xff] 0.0
      %67 = vst [vmem:[#allocation2 + $0x40] sm:$0xff] 0.0
      %68 = vst [vmem:[#allocation2 + $0x48] sm:$0xff] 0.0
      %69 = vst [vmem:[#allocation2 + $0x50] sm:$0xff] 0.0
      %70 = vst [vmem:[#allocation2 + $0x58] sm:$0xff] 0.0
      %71 = vst [vmem:[#allocation2 + $0x60] sm:$0xff] 0.0
      %72 = vst [vmem:[#allocation2 + $0x68] sm:$0xff] 0.0
      %73 = vst [vmem:[#allocation2 + $0x70] sm:$0xff] 0.0
      %74 = vst [vmem:[#allocation2 + $0x78] sm:$0xff] 0.0
    $region41: #{tpu_custom_call.1} parent=1 // pred_fallthru
      _
    %s75 = smul.u32 0, 32
    %s76 = scalar_lea.vmem [#allocation3], %s75
    %v77 = vld [vmem:[%s76] sm:$0xff]
    %v78 = vld [vmem:[%s76 + $0x8] sm:$0xff]
    %v79 = vld [vmem:[%s76 + $0x10] sm:$0xff]
    %v80 = vld [vmem:[%s76 + $0x18] sm:$0xff]
    %v81 = vld [vmem:[%s1] sm:$0xff]
    %v82 = vunpack.c.0.s8 %v81
    %v83 = vunpack.c.1.s8 %v81
    %v84 = vunpack.c.2.s8 %v81
    %v85 = vunpack.c.3.s8 %v81
    %v86 = vcvt.s32.f32 %v82
    %v87 = vcvt.s32.f32 %v83
    %v88 = vcvt.s32.f32 %v84
    %v89 = vcvt.s32.f32 %v85
    %v90 = vld [vmem:[#allocation2] sm:$0xff]
    %v91 = vld [vmem:[#allocation2 + $0x8] sm:$0xff]
    %v92 = vld [vmem:[#allocation2 + $0x10] sm:$0xff]
    %v93 = vld [vmem:[#allocation2 + $0x18] sm:$0xff]
    %v94 = vld [vmem:[#allocation2 + $0x20] sm:$0xff]
    %v95 = vld [vmem:[#allocation2 + $0x28] sm:$0xff]
    %v96 = vld [vmem:[#allocation2 + $0x30] sm:$0xff]
    %v97 = vld [vmem:[#allocation2 + $0x38] sm:$0xff]
    %v98 = vld [vmem:[#allocation2 + $0x40] sm:$0xff]
    %v99 = vld [vmem:[#allocation2 + $0x48] sm:$0xff]
    %v100 = vld [vmem:[#allocation2 + $0x50] sm:$0xff]
    %v101 = vld [vmem:[#allocation2 + $0x58] sm:$0xff]
    %v102 = vld [vmem:[#allocation2 + $0x60] sm:$0xff]
    %v103 = vld [vmem:[#allocation2 + $0x68] sm:$0xff]
    %v104 = vld [vmem:[#allocation2 + $0x70] sm:$0xff]
    %v105 = vld [vmem:[#allocation2 + $0x78] sm:$0xff]
    %106 = vxpose.xlu0.b32.start [1/16] %v86, 128
    %107 = vxpose.xlu0.b32.cont [2/16] %v87, 128
    %108 = vxpose.xlu0.b32.cont [3/16] %v88, 128
    %109 = vxpose.xlu0.b32.cont [4/16] %v89, 128
    %110 = vxpose.xlu0.b32.cont [5/16] 0.0, 128
    %111 = vxpose.xlu0.b32.cont [6/16] 0.0, 128
    %112 = vxpose.xlu0.b32.cont [7/16] 0.0, 128
    %113 = vxpose.xlu0.b32.cont [8/16] 0.0, 128
    %114 = vxpose.xlu0.b32.cont [9/16] 0.0, 128
    %115 = vxpose.xlu0.b32.cont [10/16] 0.0, 128
    %116 = vxpose.xlu0.b32.cont [11/16] 0.0, 128
    %117 = vxpose.xlu0.b32.cont [12/16] 0.0, 128
    %118 = vxpose.xlu0.b32.cont [13/16] 0.0, 128
    %119 = vxpose.xlu0.b32.cont [14/16] 0.0, 128
    %120 = vxpose.xlu0.b32.cont [15/16] 0.0, 128
    %121 = vxpose.xlu0.b32.end [16/16] 0.0, 128
    %v122 = vpop.trf.xlu0
    %v123 = vpop.trf.xlu0
    %v124 = vpop.trf.xlu0
    %v125 = vpop.trf.xlu0
    %v126 = vpop.trf.xlu0
    %v127 = vpop.trf.xlu0
    %v128 = vpop.trf.xlu0
    %v129 = vpop.trf.xlu0
    %v130 = vpop.trf.xlu0
    %v131 = vpop.trf.xlu0
    %v132 = vpop.trf.xlu0
    %v133 = vpop.trf.xlu0
    %v134 = vpop.trf.xlu0
    %v135 = vpop.trf.xlu0
    %v136 = vpop.trf.xlu0
    %v137 = vpop.trf.xlu0
    %vm138 = vcmask 261120
    %v140 = vsel %vm138, %v122, 0
    %v143 = vsel %vm138, %v123, 0
    %v146 = vsel %vm138, %v124, 0
    %v149 = vsel %vm138, %v125, 0
    %v152 = vsel %vm138, %v126, 0
    %v155 = vsel %vm138, %v127, 0
    %v158 = vsel %vm138, %v128, 0
    %v161 = vsel %vm138, %v129, 0
    %v164 = vsel %vm138, %v130, 0
    %v167 = vsel %vm138, %v131, 0
    %v170 = vsel %vm138, %v132, 0
    %v173 = vsel %vm138, %v133, 0
    %v176 = vsel %vm138, %v134, 0
    %v179 = vsel %vm138, %v135, 0
    %v182 = vsel %vm138, %v136, 0
    %v185 = vsel %vm138, %v137, 0
    %187 = vmatprep.subr.mxu0 0.0
    %188 = vmatpush1.msra.mxu0 %v77
    %189 = vmatprep.subr.mxu0 0.0
    %190 = vmatpush1.msra.mxu0 %v78
    %191 = vmatprep.subr.mxu0 0.0
    %192 = vmatpush1.msra.mxu0 %v79
    %193 = vmatprep.subr.mxu0 0.0
    %194 = vmatpush1.msra.mxu0 %v80
    %195 = vmatprep.subr.mxu0 0.0
    %196 = vmatpush1.msra.mxu0 0.0
    %197 = vmatprep.subr.mxu0 0.0
    %198 = vmatpush1.msra.mxu0 0.0
    %199 = vmatprep.subr.mxu0 0.0
    %200 = vmatpush1.msra.mxu0 0.0
    %201 = vmatprep.subr.mxu0 0.0
    %202 = vmatpush1.msra.mxu0 0.0
    %203 = vmatprep.subr.mxu0 0.0
    %204 = vmatpush1.msra.mxu0 0.0
    %205 = vmatprep.subr.mxu0 0.0
    %206 = vmatpush1.msra.mxu0 0.0
    %207 = vmatprep.subr.mxu0 0.0
    %208 = vmatpush1.msra.mxu0 0.0
    %209 = vmatprep.subr.mxu0 0.0
    %210 = vmatpush1.msra.mxu0 0.0
    %211 = vmatprep.subr.mxu0 0.0
    %212 = vmatpush1.msra.mxu0 0.0
    %213 = vmatprep.subr.mxu0 0.0
    %214 = vmatpush1.msra.mxu0 0.0
    %215 = vmatprep.subr.mxu0 0.0
    %216 = vmatpush1.msra.mxu0 0.0
    %217 = vmatprep.subr.mxu0 0.0
    %218 = vmatpush1.msra.mxu0 0.0
    %219 = vmatprep.subr.mxu0 0.0
    %220 = vmatpush1.msra.mxu0 0.0
    %221 = vmatprep.subr.mxu0 0.0
    %222 = vmatpush1.msra.mxu0 0.0
    %223 = vmatprep.subr.mxu0 0.0
    %224 = vmatpush1.msra.mxu0 0.0
    %225 = vmatprep.subr.mxu0 0.0
    %226 = vmatpush1.msra.mxu0 0.0
    %227 = vmatprep.subr.mxu0 0.0
    %228 = vmatpush1.msra.mxu0 0.0
    %229 = vmatprep.subr.mxu0 0.0
    %230 = vmatpush1.msra.mxu0 0.0
    %231 = vmatprep.subr.mxu0 0.0
    %232 = vmatpush1.msra.mxu0 0.0
    %233 = vmatprep.subr.mxu0 0.0
    %234 = vmatpush1.msra.mxu0 0.0
    %235 = vmatprep.subr.mxu0 0.0
    %236 = vmatpush1.msra.mxu0 0.0
    %237 = vmatprep.subr.mxu0 0.0
    %238 = vmatpush1.msra.mxu0 0.0
    %239 = vmatprep.subr.mxu0 0.0
    %240 = vmatpush1.msra.mxu0 0.0
    %241 = vmatprep.subr.mxu0 0.0
    %242 = vmatpush1.msra.mxu0 0.0
    %243 = vmatprep.subr.mxu0 0.0
    %244 = vmatpush1.msra.mxu0 0.0
    %245 = vmatprep.subr.mxu0 0.0
    %246 = vmatpush1.msra.mxu0 0.0
    %247 = vmatprep.subr.mxu0 0.0
    %248 = vmatpush1.msra.mxu0 0.0
    %249 = vmatprep.subr.mxu0 0.0
    %250 = vmatpush1.msra.mxu0 0.0
    %251 = vmatprep.mubr.f32.mxu0 0.0
    %252 = vmatmul.mubr.f32.gmra.mrb[0].mxu0 %v140
    %v253 = vpop.f32.mrb[0].mxu0
    %v254 = vadd.f32 0.0, %v253
    %v255 = vpop.f32.mrb[0].mxu0
    %256 = vmatprep.mubr.f32.mxu0 0.0
    %257 = vmatmul.mubr.f32.gmra.mrb[0].mxu0 %v143
    %v258 = vpop.f32.mrb[0].mxu0
    %v259 = vadd.f32 0.0, %v258
    %v260 = vpop.f32.mrb[0].mxu0
    %261 = vmatprep.mubr.f32.mxu0 0.0
    %262 = vmatmul.mubr.f32.gmra.mrb[0].mxu0 %v146
    %v263 = vpop.f32.mrb[0].mxu0
    %v264 = vadd.f32 0.0, %v263
    %v265 = vpop.f32.mrb[0].mxu0
    %266 = vmatprep.mubr.f32.mxu0 0.0
    %267 = vmatmul.mubr.f32.gmra.mrb[0].mxu0 %v149
    %v268 = vpop.f32.mrb[0].mxu0
    %v269 = vadd.f32 0.0, %v268
    %v270 = vpop.f32.mrb[0].mxu0
    %271 = vmatprep.mubr.f32.mxu0 0.0
    %272 = vmatmul.mubr.f32.gmra.mrb[0].mxu0 %v152
    %v273 = vpop.f32.mrb[0].mxu0
    %v274 = vadd.f32 0.0, %v273
    %v275 = vpop.f32.mrb[0].mxu0
    %276 = vmatprep.mubr.f32.mxu0 0.0
    %277 = vmatmul.mubr.f32.gmra.mrb[0].mxu0 %v155
    %v278 = vpop.f32.mrb[0].mxu0
    %v279 = vadd.f32 0.0, %v278
    %v280 = vpop.f32.mrb[0].mxu0
    %281 = vmatprep.mubr.f32.mxu0 0.0
    %282 = vmatmul.mubr.f32.gmra.mrb[0].mxu0 %v158
    %v283 = vpop.f32.mrb[0].mxu0
    %v284 = vadd.f32 0.0, %v283
    %v285 = vpop.f32.mrb[0].mxu0
    %286 = vmatprep.mubr.f32.mxu0 0.0
    %287 = vmatmul.mubr.f32.gmra.mrb[0].mxu0 %v161
    %v288 = vpop.f32.mrb[0].mxu0
    %v289 = vadd.f32 0.0, %v288
    %v290 = vpop.f32.mrb[0].mxu0
    %291 = vmatprep.mubr.f32.mxu0 0.0
    %292 = vmatmul.mubr.f32.gmra.mrb[0].mxu0 %v164
    %v293 = vpop.f32.mrb[0].mxu0
    %v294 = vadd.f32 0.0, %v293
    %v295 = vpop.f32.mrb[0].mxu0
    %296 = vmatprep.mubr.f32.mxu0 0.0
    %297 = vmatmul.mubr.f32.gmra.mrb[0].mxu0 %v167
    %v298 = vpop.f32.mrb[0].mxu0
    %v299 = vadd.f32 0.0, %v298
    %v300 = vpop.f32.mrb[0].mxu0
    %301 = vmatprep.mubr.f32.mxu0 0.0
    %302 = vmatmul.mubr.f32.gmra.mrb[0].mxu0 %v170
    %v303 = vpop.f32.mrb[0].mxu0
    %v304 = vadd.f32 0.0, %v303
    %v305 = vpop.f32.mrb[0].mxu0
    %306 = vmatprep.mubr.f32.mxu0 0.0
    %307 = vmatmul.mubr.f32.gmra.mrb[0].mxu0 %v173
    %v308 = vpop.f32.mrb[0].mxu0
    %v309 = vadd.f32 0.0, %v308
    %v310 = vpop.f32.mrb[0].mxu0
    %311 = vmatprep.mubr.f32.mxu0 0.0
    %312 = vmatmul.mubr.f32.gmra.mrb[0].mxu0 %v176
    %v313 = vpop.f32.mrb[0].mxu0
    %v314 = vadd.f32 0.0, %v313
    %v315 = vpop.f32.mrb[0].mxu0
    %316 = vmatprep.mubr.f32.mxu0 0.0
    %317 = vmatmul.mubr.f32.gmra.mrb[0].mxu0 %v179
    %v318 = vpop.f32.mrb[0].mxu0
    %v319 = vadd.f32 0.0, %v318
    %v320 = vpop.f32.mrb[0].mxu0
    %321 = vmatprep.mubr.f32.mxu0 0.0
    %322 = vmatmul.mubr.f32.gmra.mrb[0].mxu0 %v182
    %v323 = vpop.f32.mrb[0].mxu0
    %v324 = vadd.f32 0.0, %v323
    %v325 = vpop.f32.mrb[0].mxu0
    %326 = vmatprep.mubr.f32.mxu0 0.0
    %327 = vmatmul.mubr.f32.gmra.mrb[0].mxu0 %v185
    %v328 = vpop.f32.mrb[0].mxu0
    %v329 = vadd.f32 0.0, %v328
    %v330 = vpop.f32.mrb[0].mxu0
    %331 = vdwg.mxu0
    %v332 = vadd.f32 %v90, %v254
    %v333 = vadd.f32 %v91, %v259
    %v334 = vadd.f32 %v92, %v264
    %v335 = vadd.f32 %v93, %v269
    %v336 = vadd.f32 %v94, %v274
    %v337 = vadd.f32 %v95, %v279
    %v338 = vadd.f32 %v96, %v284
    %v339 = vadd.f32 %v97, %v289
    %v340 = vadd.f32 %v98, %v294
    %v341 = vadd.f32 %v99, %v299
    %v342 = vadd.f32 %v100, %v304
    %v343 = vadd.f32 %v101, %v309
    %v344 = vadd.f32 %v102, %v314
    %v345 = vadd.f32 %v103, %v319
    %v346 = vadd.f32 %v104, %v324
    %v347 = vadd.f32 %v105, %v329
    %348 = vst [vmem:[#allocation2] sm:$0xff] %v332
    %349 = vst [vmem:[#allocation2 + $0x8] sm:$0xff] %v333
    %350 = vst [vmem:[#allocation2 + $0x10] sm:$0xff] %v334
    %351 = vst [vmem:[#allocation2 + $0x18] sm:$0xff] %v335
    %352 = vst [vmem:[#allocation2 + $0x20] sm:$0xff] %v336
    %353 = vst [vmem:[#allocation2 + $0x28] sm:$0xff] %v337
    %354 = vst [vmem:[#allocation2 + $0x30] sm:$0xff] %v338
    %355 = vst [vmem:[#allocation2 + $0x38] sm:$0xff] %v339
    %356 = vst [vmem:[#allocation2 + $0x40] sm:$0xff] %v340
    %357 = vst [vmem:[#allocation2 + $0x48] sm:$0xff] %v341
    %358 = vst [vmem:[#allocation2 + $0x50] sm:$0xff] %v342
    %359 = vst [vmem:[#allocation2 + $0x58] sm:$0xff] %v343
    %360 = vst [vmem:[#allocation2 + $0x60] sm:$0xff] %v344
    %361 = vst [vmem:[#allocation2 + $0x68] sm:$0xff] %v345
    %362 = vst [vmem:[#allocation2 + $0x70] sm:$0xff] %v346
    %363 = vst [vmem:[#allocation2 + $0x78] sm:$0xff] %v347
    // Predicated region
    $region42: #{tpu_custom_call.1} parent=1 // pred_check
      %p364 = pneg %p55
    $region43: #{tpu_custom_call.1} parent=1 // pred_check_branch
      %366 = sbr.rel (%p364) target = $region45
    $region44: #{tpu_custom_call.1} parent=1 // pred_region
      %v367 = vld [vmem:[%s2] sm:$0xff]
      %v368 = vld [vmem:[%s2 + $0x8] sm:$0xff]
      %v369 = vld [vmem:[%s2 + $0x10] sm:$0xff]
      %v370 = vld [vmem:[%s2 + $0x18] sm:$0xff]
      %v371 = vld [vmem:[%s2 + $0x20] sm:$0xff]
      %v372 = vld [vmem:[%s2 + $0x28] sm:$0xff]
      %v373 = vld [vmem:[%s2 + $0x30] sm:$0xff]
      %v374 = vld [vmem:[%s2 + $0x38] sm:$0xff]
      %v375 = vld [vmem:[%s2 + $0x40] sm:$0xff]
      %v376 = vld [vmem:[%s2 + $0x48] sm:$0xff]
      %v377 = vld [vmem:[%s2 + $0x50] sm:$0xff]
      %v378 = vld [vmem:[%s2 + $0x58] sm:$0xff]
      %v379 = vld [vmem:[%s2 + $0x60] sm:$0xff]
      %v380 = vld [vmem:[%s2 + $0x68] sm:$0xff]
      %v381 = vld [vmem:[%s2 + $0x70] sm:$0xff]
      %v382 = vld [vmem:[%s2 + $0x78] sm:$0xff]
      %v383 = vld [vmem:[#allocation2] sm:$0xff]
      %v384 = vld [vmem:[#allocation2 + $0x8] sm:$0xff]
      %v385 = vld [vmem:[#allocation2 + $0x10] sm:$0xff]
      %v386 = vld [vmem:[#allocation2 + $0x18] sm:$0xff]
      %v387 = vld [vmem:[#allocation2 + $0x20] sm:$0xff]
      %v388 = vld [vmem:[#allocation2 + $0x28] sm:$0xff]
      %v389 = vld [vmem:[#allocation2 + $0x30] sm:$0xff]
      %v390 = vld [vmem:[#allocation2 + $0x38] sm:$0xff]
      %v391 = vld [vmem:[#allocation2 + $0x40] sm:$0xff]
      %v392 = vld [vmem:[#allocation2 + $0x48] sm:$0xff]
      %v393 = vld [vmem:[#allocation2 + $0x50] sm:$0xff]
      %v394 = vld [vmem:[#allocation2 + $0x58] sm:$0xff]
      %v395 = vld [vmem:[#allocation2 + $0x60] sm:$0xff]
      %v396 = vld [vmem:[#allocation2 + $0x68] sm:$0xff]
      %v397 = vld [vmem:[#allocation2 + $0x70] sm:$0xff]
      %v398 = vld [vmem:[#allocation2 + $0x78] sm:$0xff]
      %v399 = vld [vmem:[%s3] sm:$0xff]
      %v400 = vld [vmem:[%s3 + $0x8] sm:$0xff]
      %v401 = vld [vmem:[%s3 + $0x10] sm:$0xff]
      %v402 = vld [vmem:[%s3 + $0x18] sm:$0xff]
      %v403 = vld [vmem:[%s3 + $0x20] sm:$0xff]
      %v404 = vld [vmem:[%s3 + $0x28] sm:$0xff]
      %v405 = vld [vmem:[%s3 + $0x30] sm:$0xff]
      %v406 = vld [vmem:[%s3 + $0x38] sm:$0xff]
      %v407 = vld [vmem:[%s3 + $0x40] sm:$0xff]
      %v408 = vld [vmem:[%s3 + $0x48] sm:$0xff]
      %v409 = vld [vmem:[%s3 + $0x50] sm:$0xff]
      %v410 = vld [vmem:[%s3 + $0x58] sm:$0xff]
      %v411 = vld [vmem:[%s3 + $0x60] sm:$0xff]
      %v412 = vld [vmem:[%s3 + $0x68] sm:$0xff]
      %v413 = vld [vmem:[%s3 + $0x70] sm:$0xff]
      %v414 = vld [vmem:[%s3 + $0x78] sm:$0xff]
      %415 = vmatprep.subr.mxu0 0.0
      %416 = vmatpush1.msra.mxu0 %v399
      %417 = vmatprep.subr.mxu0 0.0
      %418 = vmatpush1.msra.mxu0 %v400
      %419 = vmatprep.subr.mxu0 0.0
      %420 = vmatpush1.msra.mxu0 %v401
      %421 = vmatprep.subr.mxu0 0.0
      %422 = vmatpush1.msra.mxu0 %v402
      %423 = vmatprep.subr.mxu0 0.0
      %424 = vmatpush1.msra.mxu0 %v403
      %425 = vmatprep.subr.mxu0 0.0
      %426 = vmatpush1.msra.mxu0 %v404
      %427 = vmatprep.subr.mxu0 0.0
      %428 = vmatpush1.msra.mxu0 %v405
      %429 = vmatprep.subr.mxu0 0.0
      %430 = vmatpush1.msra.mxu0 %v406
      %431 = vmatprep.subr.mxu0 0.0
      %432 = vmatpush1.msra.mxu0 %v407
      %433 = vmatprep.subr.mxu0 0.0
      %434 = vmatpush1.msra.mxu0 %v408
      %435 = vmatprep.subr.mxu0 0.0
      %436 = vmatpush1.msra.mxu0 %v409
      %437 = vmatprep.subr.mxu0 0.0
      %438 = vmatpush1.msra.mxu0 %v410
      %439 = vmatprep.subr.mxu0 0.0
      %440 = vmatpush1.msra.mxu0 %v411
      %441 = vmatprep.subr.mxu0 0.0
      %442 = vmatpush1.msra.mxu0 %v412
      %443 = vmatprep.subr.mxu0 0.0
      %444 = vmatpush1.msra.mxu0 %v413
      %445 = vmatprep.subr.mxu0 0.0
      %446 = vmatpush1.msra.mxu0 %v414
      %447 = vmatprep.subr.mxu0 0.0
      %448 = vmatpush1.msra.mxu0 0.0
      %449 = vmatprep.subr.mxu0 0.0
      %450 = vmatpush1.msra.mxu0 0.0
      %451 = vmatprep.subr.mxu0 0.0
      %452 = vmatpush1.msra.mxu0 0.0
      %453 = vmatprep.subr.mxu0 0.0
      %454 = vmatpush1.msra.mxu0 0.0
      %455 = vmatprep.subr.mxu0 0.0
      %456 = vmatpush1.msra.mxu0 0.0
      %457 = vmatprep.subr.mxu0 0.0
      %458 = vmatpush1.msra.mxu0 0.0
      %459 = vmatprep.subr.mxu0 0.0
      %460 = vmatpush1.msra.mxu0 0.0
      %461 = vmatprep.subr.mxu0 0.0
      %462 = vmatpush1.msra.mxu0 0.0
      %463 = vmatprep.subr.mxu0 0.0
      %464 = vmatpush1.msra.mxu0 0.0
      %465 = vmatprep.subr.mxu0 0.0
      %466 = vmatpush1.msra.mxu0 0.0
      %467 = vmatprep.subr.mxu0 0.0
      %468 = vmatpush1.msra.mxu0 0.0
      %469 = vmatprep.subr.mxu0 0.0
      %470 = vmatpush1.msra.mxu0 0.0
      %471 = vmatprep.subr.mxu0 0.0
      %472 = vmatpush1.msra.mxu0 0.0
      %473 = vmatprep.subr.mxu0 0.0
      %474 = vmatpush1.msra.mxu0 0.0
      %475 = vmatprep.subr.mxu0 0.0
      %476 = vmatpush1.msra.mxu0 0.0
      %477 = vmatprep.subr.mxu0 0.0
      %478 = vmatpush1.msra.mxu0 0.0
      %479 = vmatprep.mubr.f32.mxu0 0.0
      %480 = vmatmul.mubr.f32.gmra.mrb[0].mxu0 %v383
      %v481 = vpop.f32.mrb[0].mxu0
      %v482 = vadd.f32 0.0, %v481
      %v483 = vpop.f32.mrb[0].mxu0
      %484 = vmatprep.mubr.f32.mxu0 0.0
      %485 = vmatmul.mubr.f32.gmra.mrb[0].mxu0 %v384
      %v486 = vpop.f32.mrb[0].mxu0
      %v487 = vadd.f32 0.0, %v486
      %v488 = vpop.f32.mrb[0].mxu0
      %489 = vmatprep.mubr.f32.mxu0 0.0
      %490 = vmatmul.mubr.f32.gmra.mrb[0].mxu0 %v385
      %v491 = vpop.f32.mrb[0].mxu0
      %v492 = vadd.f32 0.0, %v491
      %v493 = vpop.f32.mrb[0].mxu0
      %494 = vmatprep.mubr.f32.mxu0 0.0
      %495 = vmatmul.mubr.f32.gmra.mrb[0].mxu0 %v386
      %v496 = vpop.f32.mrb[0].mxu0
      %v497 = vadd.f32 0.0, %v496
      %v498 = vpop.f32.mrb[0].mxu0
      %499 = vmatprep.mubr.f32.mxu0 0.0
      %500 = vmatmul.mubr.f32.gmra.mrb[0].mxu0 %v387
      %v501 = vpop.f32.mrb[0].mxu0
      %v502 = vadd.f32 0.0, %v501
      %v503 = vpop.f32.mrb[0].mxu0
      %504 = vmatprep.mubr.f32.mxu0 0.0
      %505 = vmatmul.mubr.f32.gmra.mrb[0].mxu0 %v388
      %v506 = vpop.f32.mrb[0].mxu0
      %v507 = vadd.f32 0.0, %v506
      %v508 = vpop.f32.mrb[0].mxu0
      %509 = vmatprep.mubr.f32.mxu0 0.0
      %510 = vmatmul.mubr.f32.gmra.mrb[0].mxu0 %v389
      %v511 = vpop.f32.mrb[0].mxu0
      %v512 = vadd.f32 0.0, %v511
      %v513 = vpop.f32.mrb[0].mxu0
      %514 = vmatprep.mubr.f32.mxu0 0.0
      %515 = vmatmul.mubr.f32.gmra.mrb[0].mxu0 %v390
      %v516 = vpop.f32.mrb[0].mxu0
      %v517 = vadd.f32 0.0, %v516
      %v518 = vpop.f32.mrb[0].mxu0
      %519 = vmatprep.mubr.f32.mxu0 0.0
      %520 = vmatmul.mubr.f32.gmra.mrb[0].mxu0 %v391
      %v521 = vpop.f32.mrb[0].mxu0
      %v522 = vadd.f32 0.0, %v521
      %v523 = vpop.f32.mrb[0].mxu0
      %524 = vmatprep.mubr.f32.mxu0 0.0
      %525 = vmatmul.mubr.f32.gmra.mrb[0].mxu0 %v392
      %v526 = vpop.f32.mrb[0].mxu0
      %v527 = vadd.f32 0.0, %v526
      %v528 = vpop.f32.mrb[0].mxu0
      %529 = vmatprep.mubr.f32.mxu0 0.0
      %530 = vmatmul.mubr.f32.gmra.mrb[0].mxu0 %v393
      %v531 = vpop.f32.mrb[0].mxu0
      %v532 = vadd.f32 0.0, %v531
      %v533 = vpop.f32.mrb[0].mxu0
      %534 = vmatprep.mubr.f32.mxu0 0.0
      %535 = vmatmul.mubr.f32.gmra.mrb[0].mxu0 %v394
      %v536 = vpop.f32.mrb[0].mxu0
      %v537 = vadd.f32 0.0, %v536
      %v538 = vpop.f32.mrb[0].mxu0
      %539 = vmatprep.mubr.f32.mxu0 0.0
      %540 = vmatmul.mubr.f32.gmra.mrb[0].mxu0 %v395
      %v541 = vpop.f32.mrb[0].mxu0
      %v542 = vadd.f32 0.0, %v541
      %v543 = vpop.f32.mrb[0].mxu0
      %544 = vmatprep.mubr.f32.mxu0 0.0
      %545 = vmatmul.mubr.f32.gmra.mrb[0].mxu0 %v396
      %v546 = vpop.f32.mrb[0].mxu0
      %v547 = vadd.f32 0.0, %v546
      %v548 = vpop.f32.mrb[0].mxu0
      %549 = vmatprep.mubr.f32.mxu0 0.0
      %550 = vmatmul.mubr.f32.gmra.mrb[0].mxu0 %v397
      %v551 = vpop.f32.mrb[0].mxu0
      %v552 = vadd.f32 0.0, %v551
      %v553 = vpop.f32.mrb[0].mxu0
      %554 = vmatprep.mubr.f32.mxu0 0.0
      %555 = vmatmul.mubr.f32.gmra.mrb[0].mxu0 %v398
      %v556 = vpop.f32.mrb[0].mxu0
      %v557 = vadd.f32 0.0, %v556
      %v558 = vpop.f32.mrb[0].mxu0
      %559 = vdwg.mxu0
      %561 = vset.pattern.permute.xlu0 0
      %562 = vperm.xlu0 %561, %v367
      %v563 = vpop.permute.xlu0 %562
      %566 = vset.pattern.permute.xlu0 0
      %567 = vperm.xlu0 %566, %v368
      %v568 = vpop.permute.xlu0 %567
      %571 = vset.pattern.permute.xlu0 0
      %572 = vperm.xlu0 %571, %v369
      %v573 = vpop.permute.xlu0 %572
      %576 = vset.pattern.permute.xlu0 0
      %577 = vperm.xlu0 %576, %v370
      %v578 = vpop.permute.xlu0 %577
      %581 = vset.pattern.permute.xlu0 0
      %582 = vperm.xlu0 %581, %v371
      %v583 = vpop.permute.xlu0 %582
      %586 = vset.pattern.permute.xlu0 0
      %587 = vperm.xlu0 %586, %v372
      %v588 = vpop.permute.xlu0 %587
      %591 = vset.pattern.permute.xlu0 0
      %592 = vperm.xlu0 %591, %v373
      %v593 = vpop.permute.xlu0 %592
      %596 = vset.pattern.permute.xlu0 0
      %597 = vperm.xlu0 %596, %v374
      %v598 = vpop.permute.xlu0 %597
      %601 = vset.pattern.permute.xlu0 0
      %602 = vperm.xlu0 %601, %v375
      %v603 = vpop.permute.xlu0 %602
      %606 = vset.pattern.permute.xlu0 0
      %607 = vperm.xlu0 %606, %v376
      %v608 = vpop.permute.xlu0 %607
      %611 = vset.pattern.permute.xlu0 0
      %612 = vperm.xlu0 %611, %v377
      %v613 = vpop.permute.xlu0 %612
      %616 = vset.pattern.permute.xlu0 0
      %617 = vperm.xlu0 %616, %v378
      %v618 = vpop.permute.xlu0 %617
      %621 = vset.pattern.permute.xlu0 0
      %622 = vperm.xlu0 %621, %v379
      %v623 = vpop.permute.xlu0 %622
      %626 = vset.pattern.permute.xlu0 0
      %627 = vperm.xlu0 %626, %v380
      %v628 = vpop.permute.xlu0 %627
      %631 = vset.pattern.permute.xlu0 0
      %632 = vperm.xlu0 %631, %v381
      %v633 = vpop.permute.xlu0 %632
      %636 = vset.pattern.permute.xlu0 0
      %637 = vperm.xlu0 %636, %v382
      %v638 = vpop.permute.xlu0 %637
      %v640 = vmul.f32 %v482, %v563
      %v641 = vmul.f32 %v487, %v568
      %v642 = vmul.f32 %v492, %v573
      %v643 = vmul.f32 %v497, %v578
      %v644 = vmul.f32 %v502, %v583
      %v645 = vmul.f32 %v507, %v588
      %v646 = vmul.f32 %v512, %v593
      %v647 = vmul.f32 %v517, %v598
      %v648 = vmul.f32 %v522, %v603
      %v649 = vmul.f32 %v527, %v608
      %v650 = vmul.f32 %v532, %v613
      %v651 = vmul.f32 %v537, %v618
      %v652 = vmul.f32 %v542, %v623
      %v653 = vmul.f32 %v547, %v628
      %v654 = vmul.f32 %v552, %v633
      %v655 = vmul.f32 %v557, %v638
      %v656 = vld [vmem:[%s4] sm:$0x1]
      %657 = vset.pattern.permute.xlu0 1
      %658 = vperm.xlu0 %657, %v367
      %v659 = vpop.permute.xlu0 %658
      %661 = vset.pattern.permute.xlu0 1
      %662 = vperm.xlu0 %661, %v368
      %v663 = vpop.permute.xlu0 %662
      %665 = vset.pattern.permute.xlu0 1
      %666 = vperm.xlu0 %665, %v369
      %v667 = vpop.permute.xlu0 %666
      %669 = vset.pattern.permute.xlu0 1
      %670 = vperm.xlu0 %669, %v370
      %v671 = vpop.permute.xlu0 %670
      %673 = vset.pattern.permute.xlu0 1
      %674 = vperm.xlu0 %673, %v371
      %v675 = vpop.permute.xlu0 %674
      %677 = vset.pattern.permute.xlu0 1
      %678 = vperm.xlu0 %677, %v372
      %v679 = vpop.permute.xlu0 %678
      %681 = vset.pattern.permute.xlu0 1
      %682 = vperm.xlu0 %681, %v373
      %v683 = vpop.permute.xlu0 %682
      %685 = vset.pattern.permute.xlu0 1
      %686 = vperm.xlu0 %685, %v374
      %v687 = vpop.permute.xlu0 %686
      %689 = vset.pattern.permute.xlu0 1
      %690 = vperm.xlu0 %689, %v375
      %v691 = vpop.permute.xlu0 %690
      %693 = vset.pattern.permute.xlu0 1
      %694 = vperm.xlu0 %693, %v376
      %v695 = vpop.permute.xlu0 %694
      %697 = vset.pattern.permute.xlu0 1
      %698 = vperm.xlu0 %697, %v377
      %v699 = vpop.permute.xlu0 %698
      %701 = vset.pattern.permute.xlu0 1
      %702 = vperm.xlu0 %701, %v378
      %v703 = vpop.permute.xlu0 %702
      %705 = vset.pattern.permute.xlu0 1
      %706 = vperm.xlu0 %705, %v379
      %v707 = vpop.permute.xlu0 %706
      %709 = vset.pattern.permute.xlu0 1
      %710 = vperm.xlu0 %709, %v380
      %v711 = vpop.permute.xlu0 %710
      %713 = vset.pattern.permute.xlu0 1
      %714 = vperm.xlu0 %713, %v381
      %v715 = vpop.permute.xlu0 %714
      %717 = vset.pattern.permute.xlu0 1
      %718 = vperm.xlu0 %717, %v382
      %v719 = vpop.permute.xlu0 %718
      %v722 = vlaneseq
      %v723 = vshrl.u32 %v722, 7
      %v724 = vsub.s32 0, %v723
      %v725 = vrot.slane %v656, %v724
      %v727 = vmul.f32 %v659, %v725
      %v728 = vmul.f32 %v663, %v725
      %v729 = vmul.f32 %v667, %v725
      %v730 = vmul.f32 %v671, %v725
      %v731 = vmul.f32 %v675, %v725
      %v732 = vmul.f32 %v679, %v725
      %v733 = vmul.f32 %v683, %v725
      %v734 = vmul.f32 %v687, %v725
      %v735 = vmul.f32 %v691, %v725
      %v736 = vmul.f32 %v695, %v725
      %v737 = vmul.f32 %v699, %v725
      %v738 = vmul.f32 %v703, %v725
      %v739 = vmul.f32 %v707, %v725
      %v740 = vmul.f32 %v711, %v725
      %v741 = vmul.f32 %v715, %v725
      %v742 = vmul.f32 %v719, %v725
      %v743 = vadd.f32 %v640, %v727
      %v744 = vadd.f32 %v641, %v728
      %v745 = vadd.f32 %v642, %v729
      %v746 = vadd.f32 %v643, %v730
      %v747 = vadd.f32 %v644, %v731
      %v748 = vadd.f32 %v645, %v732
      %v749 = vadd.f32 %v646, %v733
      %v750 = vadd.f32 %v647, %v734
      %v751 = vadd.f32 %v648, %v735
      %v752 = vadd.f32 %v649, %v736
      %v753 = vadd.f32 %v650, %v737
      %v754 = vadd.f32 %v651, %v738
      %v755 = vadd.f32 %v652, %v739
      %v756 = vadd.f32 %v653, %v740
      %v757 = vadd.f32 %v654, %v741
      %v758 = vadd.f32 %v655, %v742
      %v759 = vmax.f32 %v743, 0.0
      %v760 = vmax.f32 %v744, 0.0
      %v761 = vmax.f32 %v745, 0.0
      %v762 = vmax.f32 %v746, 0.0
      %v763 = vmax.f32 %v747, 0.0
      %v764 = vmax.f32 %v748, 0.0
      %v765 = vmax.f32 %v749, 0.0
      %v766 = vmax.f32 %v750, 0.0
      %v767 = vmax.f32 %v751, 0.0
      %v768 = vmax.f32 %v752, 0.0
      %v769 = vmax.f32 %v753, 0.0
      %v770 = vmax.f32 %v754, 0.0
      %v771 = vmax.f32 %v755, 0.0
      %v772 = vmax.f32 %v756, 0.0
      %v773 = vmax.f32 %v757, 0.0
      %v774 = vmax.f32 %v758, 0.0
      %v775 = vld [vmem:[#allocation6] sm:$0xff]
      %v776 = vld [vmem:[#allocation6 + $0x8] sm:$0xff]
      %v777 = vld [vmem:[#allocation6 + $0x10] sm:$0xff]
      %v778 = vld [vmem:[#allocation6 + $0x18] sm:$0xff]
      %v779 = vld [vmem:[#allocation6 + $0x20] sm:$0xff]
      %v780 = vld [vmem:[#allocation6 + $0x28] sm:$0xff]
      %v781 = vld [vmem:[#allocation6 + $0x30] sm:$0xff]
      %v782 = vld [vmem:[#allocation6 + $0x38] sm:$0xff]
      %v783 = vld [vmem:[#allocation6 + $0x40] sm:$0xff]
      %v784 = vld [vmem:[#allocation6 + $0x48] sm:$0xff]
      %v785 = vld [vmem:[#allocation6 + $0x50] sm:$0xff]
      %v786 = vld [vmem:[#allocation6 + $0x58] sm:$0xff]
      %v787 = vld [vmem:[#allocation6 + $0x60] sm:$0xff]
      %v788 = vld [vmem:[#allocation6 + $0x68] sm:$0xff]
      %v789 = vld [vmem:[#allocation6 + $0x70] sm:$0xff]
      %v790 = vld [vmem:[#allocation6 + $0x78] sm:$0xff]
      %v791 = vld [vmem:[%s6] sm:$0x1]
      %v793 = vlaneseq
      %v794 = vshrl.u32 %v793, 7
      %v795 = vsub.s32 0, %v794
      %v796 = vrot.slane %v791, %v795
      %798 = vmatprep.subr.mxu0 0.0
      %799 = vmatpush1.msra.mxu0 %v775
      %800 = vmatprep.subr.mxu0 0.0
      %801 = vmatpush1.msra.mxu0 %v776
      %802 = vmatprep.subr.mxu0 0.0
      %803 = vmatpush1.msra.mxu0 %v777
      %804 = vmatprep.subr.mxu0 0.0
      %805 = vmatpush1.msra.mxu0 %v778
      %806 = vmatprep.subr.mxu0 0.0
      %807 = vmatpush1.msra.mxu0 %v779
      %808 = vmatprep.subr.mxu0 0.0
      %809 = vmatpush1.msra.mxu0 %v780
      %810 = vmatprep.subr.mxu0 0.0
      %811 = vmatpush1.msra.mxu0 %v781
      %812 = vmatprep.subr.mxu0 0.0
      %813 = vmatpush1.msra.mxu0 %v782
      %814 = vmatprep.subr.mxu0 0.0
      %815 = vmatpush1.msra.mxu0 %v783
      %816 = vmatprep.subr.mxu0 0.0
      %817 = vmatpush1.msra.mxu0 %v784
      %818 = vmatprep.subr.mxu0 0.0
      %819 = vmatpush1.msra.mxu0 %v785
      %820 = vmatprep.subr.mxu0 0.0
      %821 = vmatpush1.msra.mxu0 %v786
      %822 = vmatprep.subr.mxu0 0.0
      %823 = vmatpush1.msra.mxu0 %v787
      %824 = vmatprep.subr.mxu0 0.0
      %825 = vmatpush1.msra.mxu0 %v788
      %826 = vmatprep.subr.mxu0 0.0
      %827 = vmatpush1.msra.mxu0 %v789
      %828 = vmatprep.subr.mxu0 0.0
      %829 = vmatpush1.msra.mxu0 %v790
      %830 = vmatprep.subr.mxu0 0.0
      %831 = vmatpush1.msra.mxu0 0.0
      %832 = vmatprep.subr.mxu0 0.0
      %833 = vmatpush1.msra.mxu0 0.0
      %834 = vmatprep.subr.mxu0 0.0
      %835 = vmatpush1.msra.mxu0 0.0
      %836 = vmatprep.subr.mxu0 0.0
      %837 = vmatpush1.msra.mxu0 0.0
      %838 = vmatprep.subr.mxu0 0.0
      %839 = vmatpush1.msra.mxu0 0.0
      %840 = vmatprep.subr.mxu0 0.0
      %841 = vmatpush1.msra.mxu0 0.0
      %842 = vmatprep.subr.mxu0 0.0
      %843 = vmatpush1.msra.mxu0 0.0
      %844 = vmatprep.subr.mxu0 0.0
      %845 = vmatpush1.msra.mxu0 0.0
      %846 = vmatprep.subr.mxu0 0.0
      %847 = vmatpush1.msra.mxu0 0.0
      %848 = vmatprep.subr.mxu0 0.0
      %849 = vmatpush1.msra.mxu0 0.0
      %850 = vmatprep.subr.mxu0 0.0
      %851 = vmatpush1.msra.mxu0 0.0
      %852 = vmatprep.subr.mxu0 0.0
      %853 = vmatpush1.msra.mxu0 0.0
      %854 = vmatprep.subr.mxu0 0.0
      %855 = vmatpush1.msra.mxu0 0.0
      %856 = vmatprep.subr.mxu0 0.0
      %857 = vmatpush1.msra.mxu0 0.0
      %858 = vmatprep.subr.mxu0 0.0
      %859 = vmatpush1.msra.mxu0 0.0
      %860 = vmatprep.subr.mxu0 0.0
      %861 = vmatpush1.msra.mxu0 0.0
      %862 = vmatprep.mubr.f32.mxu0 0.0
      %863 = vmatmul.mubr.f32.gmra.mrb[0].mxu0 %v759
      %v864 = vpop.f32.mrb[0].mxu0
      %v865 = vadd.f32 %v796, %v864
      %v866 = vpop.f32.mrb[0].mxu0
      %867 = vmatprep.mubr.f32.mxu0 0.0
      %868 = vmatmul.mubr.f32.gmra.mrb[0].mxu0 %v760
      %v869 = vpop.f32.mrb[0].mxu0
      %v870 = vadd.f32 %v796, %v869
      %v871 = vpop.f32.mrb[0].mxu0
      %872 = vmatprep.mubr.f32.mxu0 0.0
      %873 = vmatmul.mubr.f32.gmra.mrb[0].mxu0 %v761
      %v874 = vpop.f32.mrb[0].mxu0
      %v875 = vadd.f32 %v796, %v874
      %v876 = vpop.f32.mrb[0].mxu0
      %877 = vmatprep.mubr.f32.mxu0 0.0
      %878 = vmatmul.mubr.f32.gmra.mrb[0].mxu0 %v762
      %v879 = vpop.f32.mrb[0].mxu0
      %v880 = vadd.f32 %v796, %v879
      %v881 = vpop.f32.mrb[0].mxu0
      %882 = vmatprep.mubr.f32.mxu0 0.0
      %883 = vmatmul.mubr.f32.gmra.mrb[0].mxu0 %v763
      %v884 = vpop.f32.mrb[0].mxu0
      %v885 = vadd.f32 %v796, %v884
      %v886 = vpop.f32.mrb[0].mxu0
      %887 = vmatprep.mubr.f32.mxu0 0.0
      %888 = vmatmul.mubr.f32.gmra.mrb[0].mxu0 %v764
      %v889 = vpop.f32.mrb[0].mxu0
      %v890 = vadd.f32 %v796, %v889
      %v891 = vpop.f32.mrb[0].mxu0
      %892 = vmatprep.mubr.f32.mxu0 0.0
      %893 = vmatmul.mubr.f32.gmra.mrb[0].mxu0 %v765
      %v894 = vpop.f32.mrb[0].mxu0
      %v895 = vadd.f32 %v796, %v894
      %v896 = vpop.f32.mrb[0].mxu0
      %897 = vmatprep.mubr.f32.mxu0 0.0
      %898 = vmatmul.mubr.f32.gmra.mrb[0].mxu0 %v766
      %v899 = vpop.f32.mrb[0].mxu0
      %v900 = vadd.f32 %v796, %v899
      %v901 = vpop.f32.mrb[0].mxu0
      %902 = vmatprep.mubr.f32.mxu0 0.0
      %903 = vmatmul.mubr.f32.gmra.mrb[0].mxu0 %v767
      %v904 = vpop.f32.mrb[0].mxu0
      %v905 = vadd.f32 %v796, %v904
      %v906 = vpop.f32.mrb[0].mxu0
      %907 = vmatprep.mubr.f32.mxu0 0.0
      %908 = vmatmul.mubr.f32.gmra.mrb[0].mxu0 %v768
      %v909 = vpop.f32.mrb[0].mxu0
      %v910 = vadd.f32 %v796, %v909
      %v911 = vpop.f32.mrb[0].mxu0
      %912 = vmatprep.mubr.f32.mxu0 0.0
      %913 = vmatmul.mubr.f32.gmra.mrb[0].mxu0 %v769
      %v914 = vpop.f32.mrb[0].mxu0
      %v915 = vadd.f32 %v796, %v914
      %v916 = vpop.f32.mrb[0].mxu0
      %917 = vmatprep.mubr.f32.mxu0 0.0
      %918 = vmatmul.mubr.f32.gmra.mrb[0].mxu0 %v770
      %v919 = vpop.f32.mrb[0].mxu0
      %v920 = vadd.f32 %v796, %v919
      %v921 = vpop.f32.mrb[0].mxu0
      %922 = vmatprep.mubr.f32.mxu0 0.0
      %923 = vmatmul.mubr.f32.gmra.mrb[0].mxu0 %v771
      %v924 = vpop.f32.mrb[0].mxu0
      %v925 = vadd.f32 %v796, %v924
      %v926 = vpop.f32.mrb[0].mxu0
      %927 = vmatprep.mubr.f32.mxu0 0.0
      %928 = vmatmul.mubr.f32.gmra.mrb[0].mxu0 %v772
      %v929 = vpop.f32.mrb[0].mxu0
      %v930 = vadd.f32 %v796, %v929
      %v931 = vpop.f32.mrb[0].mxu0
      %932 = vmatprep.mubr.f32.mxu0 0.0
      %933 = vmatmul.mubr.f32.gmra.mrb[0].mxu0 %v773
      %v934 = vpop.f32.mrb[0].mxu0
      %v935 = vadd.f32 %v796, %v934
      %v936 = vpop.f32.mrb[0].mxu0
      %937 = vmatprep.mubr.f32.mxu0 0.0
      %938 = vmatmul.mubr.f32.gmra.mrb[0].mxu0 %v774
      %v939 = vpop.f32.mrb[0].mxu0
      %v940 = vadd.f32 %v796, %v939
      %v941 = vpop.f32.mrb[0].mxu0
      %942 = vdwg.mxu0
      %943 = vset.pattern.permute.xlu0 2
      %944 = vperm.xlu0 %943, %v367
      %v945 = vpop.permute.xlu0 %944
      %947 = vset.pattern.permute.xlu0 2
      %948 = vperm.xlu0 %947, %v368
      %v949 = vpop.permute.xlu0 %948
      %951 = vset.pattern.permute.xlu0 2
      %952 = vperm.xlu0 %951, %v369
      %v953 = vpop.permute.xlu0 %952
      %955 = vset.pattern.permute.xlu0 2
      %956 = vperm.xlu0 %955, %v370
      %v957 = vpop.permute.xlu0 %956
      %959 = vset.pattern.permute.xlu0 2
      %960 = vperm.xlu0 %959, %v371
      %v961 = vpop.permute.xlu0 %960
      %963 = vset.pattern.permute.xlu0 2
      %964 = vperm.xlu0 %963, %v372
      %v965 = vpop.permute.xlu0 %964
      %967 = vset.pattern.permute.xlu0 2
      %968 = vperm.xlu0 %967, %v373
      %v969 = vpop.permute.xlu0 %968
      %971 = vset.pattern.permute.xlu0 2
      %972 = vperm.xlu0 %971, %v374
      %v973 = vpop.permute.xlu0 %972
      %975 = vset.pattern.permute.xlu0 2
      %976 = vperm.xlu0 %975, %v375
      %v977 = vpop.permute.xlu0 %976
      %979 = vset.pattern.permute.xlu0 2
      %980 = vperm.xlu0 %979, %v376
      %v981 = vpop.permute.xlu0 %980
      %983 = vset.pattern.permute.xlu0 2
      %984 = vperm.xlu0 %983, %v377
      %v985 = vpop.permute.xlu0 %984
      %987 = vset.pattern.permute.xlu0 2
      %988 = vperm.xlu0 %987, %v378
      %v989 = vpop.permute.xlu0 %988
      %991 = vset.pattern.permute.xlu0 2
      %992 = vperm.xlu0 %991, %v379
      %v993 = vpop.permute.xlu0 %992
      %995 = vset.pattern.permute.xlu0 2
      %996 = vperm.xlu0 %995, %v380
      %v997 = vpop.permute.xlu0 %996
      %999 = vset.pattern.permute.xlu0 2
      %1000 = vperm.xlu0 %999, %v381
      %v1001 = vpop.permute.xlu0 %1000
      %1003 = vset.pattern.permute.xlu0 2
      %1004 = vperm.xlu0 %1003, %v382
      %v1005 = vpop.permute.xlu0 %1004
      %v1007 = vmul.f32 %v865, %v945
      %v1008 = vmul.f32 %v870, %v949
      %v1009 = vmul.f32 %v875, %v953
      %v1010 = vmul.f32 %v880, %v957
      %v1011 = vmul.f32 %v885, %v961
      %v1012 = vmul.f32 %v890, %v965
      %v1013 = vmul.f32 %v895, %v969
      %v1014 = vmul.f32 %v900, %v973
      %v1015 = vmul.f32 %v905, %v977
      %v1016 = vmul.f32 %v910, %v981
      %v1017 = vmul.f32 %v915, %v985
      %v1018 = vmul.f32 %v920, %v989
      %v1019 = vmul.f32 %v925, %v993
      %v1020 = vmul.f32 %v930, %v997
      %v1021 = vmul.f32 %v935, %v1001
      %v1022 = vmul.f32 %v940, %v1005
      %1023 = vst [vmem:[#allocation8] sm:$0xff] %v1007
      %1024 = vst [vmem:[#allocation8 + $0x8] sm:$0xff] %v1008
      %1025 = vst [vmem:[#allocation8 + $0x10] sm:$0xff] %v1009
      %1026 = vst [vmem:[#allocation8 + $0x18] sm:$0xff] %v1010
      %1027 = vst [vmem:[#allocation8 + $0x20] sm:$0xff] %v1011
      %1028 = vst [vmem:[#allocation8 + $0x28] sm:$0xff] %v1012
      %1029 = vst [vmem:[#allocation8 + $0x30] sm:$0xff] %v1013
      %1030 = vst [vmem:[#allocation8 + $0x38] sm:$0xff] %v1014
      %1031 = vst [vmem:[#allocation8 + $0x40] sm:$0xff] %v1015
      %1032 = vst [vmem:[#allocation8 + $0x48] sm:$0xff] %v1016
      %1033 = vst [vmem:[#allocation8 + $0x50] sm:$0xff] %v1017
      %1034 = vst [vmem:[#allocation8 + $0x58] sm:$0xff] %v1018
      %1035 = vst [vmem:[#allocation8 + $0x60] sm:$0xff] %v1019
      %1036 = vst [vmem:[#allocation8 + $0x68] sm:$0xff] %v1020
      %1037 = vst [vmem:[#allocation8 + $0x70] sm:$0xff] %v1021
      %1038 = vst [vmem:[#allocation8 + $0x78] sm:$0xff] %v1022
    $region45: #{tpu_custom_call.1} parent=1 // pred_fallthru
      _
    // Predicated region
    $region46: #{tpu_custom_call.1} parent=1 // pred_check
      _
    $region47: #{tpu_custom_call.1} parent=1 // pred_check_branch
      %1040 = sbr.rel (0) target = $region49
    $region48: #{tpu_custom_call.1} parent=1 // pred_region
      %s1042 = ssub.s32 2048, 2048
      %1043 = vsyncadd [#allocation5], %s1042
      %s1044 = sshll.u32 [#allocation8], 4
      %s1045 = int_to_ptr.vmem [resolvable:$true] %s1044
      %1050 = dma.vmem_to_hbm [thread:$0]  %s1045, 2048, %s7, [#allocation5], 128, 128, 8
    $region49: #{tpu_custom_call.1} parent=1 // pred_fallthru
      _
    // Predicated region
    $region50: #{tpu_custom_call.1} parent=1 // pred_check
      _
    $region51: #{tpu_custom_call.1} parent=1 // pred_check_branch
      %1052 = sbr.rel (0) target = $region53
    $region52: #{tpu_custom_call.1} parent=1 // pred_region
      %1053 = dma.done [#allocation5], 2048
    $region53: #{tpu_custom_call.1} parent=1 // pred_fallthru
      _
    %1054 = vsyncpa [#allocation4], 1
    %1055 = vsyncpa [#allocation7], 1
    %1056 = vsyncpa [#allocation5], 1

</llo_original>
